<compile_context>
chip_gen: v6e
topology: v6e:2x2x1
jax: 0.10.0
libtpu: 0.0.40
codegen_flags: <defaults>
</compile_context>

<pallas_src>
import functools
import math

import jax
import jax.numpy as jnp
from jax.experimental import pallas as pl
from jax.experimental.pallas import tpu as pltpu


DEFAULT_MASK_VALUE = -0.7 * float(jnp.finfo(jnp.float32).max)


def _divisor_tile(dim, preferred, quantum):
    """Largest multiple-of-`quantum` divisor of dim that is <= preferred,
    falling back to the full dim (used where exact division is required)."""
    if dim <= preferred:
        return dim
    t = (preferred // quantum) * quantum
    while t >= quantum:
        if dim % t == 0:
            return t
        t -= quantum
    return dim


# ----------------------------- tiled linear ------------------------------- #

def _matmul_kernel(x_ref, w_ref, b_ref, o_ref, acc_ref):
    kk = pl.program_id(2)

    @pl.when(kk == 0)
    def _():
        acc_ref[...] = jnp.zeros_like(acc_ref)

    acc_ref[...] += jnp.dot(x_ref[...], w_ref[...],
                            preferred_element_type=jnp.float32)

    @pl.when(kk == pl.num_programs(2) - 1)
    def _():
        o_ref[...] = (acc_ref[...] + b_ref[...]).astype(o_ref.dtype)


def pallas_linear(x, w, b, *, tm=256, tn=512, tk=512):
    """x: [M, K] @ w: [K, N] + b: [N] -> [M, N] (tiled, fp32 accumulation)."""
    M, K = x.shape
    N = w.shape[1]
    tm = M if M <= tm else tm                 # M/N tiles may pad (writes masked)
    tn = N if N <= tn else tn
    tk = _divisor_tile(K, tk, 128)            # K must divide exactly (reduction)
    grid = (pl.cdiv(M, tm), pl.cdiv(N, tn), K // tk)
    return pl.pallas_call(
        _matmul_kernel,
        out_shape=jax.ShapeDtypeStruct((M, N), x.dtype),
        grid=grid,
        in_specs=[
            pl.BlockSpec((tm, tk), lambda i, j, kk: (i, kk)),
            pl.BlockSpec((tk, tn), lambda i, j, kk: (kk, j)),
            pl.BlockSpec((1, tn), lambda i, j, kk: (0, j)),
        ],
        out_specs=pl.BlockSpec((tm, tn), lambda i, j, kk: (i, j)),
        scratch_shapes=[pltpu.VMEM((tm, tn), jnp.float32)],
        compiler_params=pltpu.CompilerParams(
            dimension_semantics=("parallel", "parallel", "arbitrary")),
    )(x, w, b.reshape(1, N))


# ------------------------- flash-style attention --------------------------- #

def _flash_kernel(*refs, heads, d_k, scale, has_mask):
    if has_mask:
        q_ref, k_ref, v_ref, mask_ref, o_ref, acc_ref, m_ref, l_ref = refs
    else:
        q_ref, k_ref, v_ref, o_ref, acc_ref, m_ref, l_ref = refs
        mask_ref = None

    ki = pl.program_id(2)

    @pl.when(ki == 0)
    def _():
        m_ref[...] = jnp.full_like(m_ref, -jnp.inf)
        l_ref[...] = jnp.zeros_like(l_ref)
        acc_ref[...] = jnp.zeros_like(acc_ref)

    # Fold the 1/sqrt(d_k) scale into q (cheaper than scaling [tq, tk] scores).
    q = q_ref[0] * scale                       # [tq, H*d_k]
    k = k_ref[0]                               # [tk, H*d_k]
    v = v_ref[0]                               # [tk, H*d_k]
    if has_mask:
        visible = mask_ref[0] > 0.5            # [tq|1, tk] (broadcasts over tq)

    # NT matmul: contract on the last dim of both q and k (no explicit k.T).
    nt_dims = (((1,), (1,)), ((), ()))

    for h in range(heads):
        sl = slice(h * d_k, (h + 1) * d_k)
        s = jax.lax.dot_general(q[:, sl], k[:, sl], nt_dims,
                                preferred_element_type=jnp.float32)  # [tq, tk]
        if has_mask:
            s = jnp.where(visible, s, DEFAULT_MASK_VALUE)

        m_prev = m_ref[h]                                       # [tq, 1]
        l_prev = l_ref[h]
        m_new = jnp.maximum(m_prev, jnp.max(s, axis=-1, keepdims=True))
        alpha = jnp.exp(m_prev - m_new)
        p = jnp.exp(s - m_new)
        l_ref[h] = alpha * l_prev + jnp.sum(p, axis=-1, keepdims=True)
        acc_ref[h] = alpha * acc_ref[h] + jnp.dot(
            p.astype(v.dtype), v[:, sl], preferred_element_type=jnp.float32)
        m_ref[h] = m_new

    @pl.when(ki == pl.num_programs(2) - 1)
    def _():
        for h in range(heads):
            inv_l = pl.reciprocal(l_ref[h])    # approx=True OK with bf16 outputs
            o_ref[0, :, h * d_k:(h + 1) * d_k] = (
                acc_ref[h] * inv_l).astype(o_ref.dtype)


def pallas_flash_attention(q, k, v, mask, scale, heads):
    """q: [B,Sq,H*d_k], k/v: [B,Sk,H*d_k], mask: [B|1, Sq|1, Sk] or None."""
    B, Sq, Dm = q.shape
    Sk = k.shape[1]
    d_k = Dm // heads
    tq = Sq if Sq <= 256 else 256              # Sq may pad (output rows masked)
    tk = _divisor_tile(Sk, 512, 128)           # Sk must divide exactly (softmax)
    grid = (B, pl.cdiv(Sq, tq), Sk // tk)
    has_mask = mask is not None

    in_specs = [
        pl.BlockSpec((1, tq, Dm), lambda b, qi, ki: (b, qi, 0)),
        pl.BlockSpec((1, tk, Dm), lambda b, qi, ki: (b, ki, 0)),
        pl.BlockSpec((1, tk, Dm), lambda b, qi, ki: (b, ki, 0)),
    ]
    inputs = [q, k, v]
    if has_mask:
        Bm, Sqm, _ = mask.shape
        mtq = tq if Sqm == Sq else 1

        def mask_map(b, qi, ki, _bm=Bm, _sqm=Sqm):
            return (b if _bm > 1 else 0, qi if _sqm > 1 else 0, ki)

        in_specs.append(pl.BlockSpec((1, mtq, tk), mask_map))
        inputs.append(mask)

    kernel = functools.partial(_flash_kernel, heads=heads, d_k=d_k,
                               scale=scale, has_mask=has_mask)
    return pl.pallas_call(
        kernel,
        out_shape=jax.ShapeDtypeStruct((B, Sq, Dm), q.dtype),
        grid=grid,
        in_specs=in_specs,
        out_specs=pl.BlockSpec((1, tq, Dm), lambda b, qi, ki: (b, qi, 0)),
        scratch_shapes=[
            pltpu.VMEM((heads, tq, d_k), jnp.float32),   # acc
            pltpu.VMEM((heads, tq, 1), jnp.float32),     # running max m
            pltpu.VMEM((heads, tq, 1), jnp.float32),     # running sum l
        ],
        compiler_params=pltpu.CompilerParams(
            dimension_semantics=("parallel", "parallel", "arbitrary")),
    )(*inputs)


# --------------------------- full MHA forward ------------------------------ #

def multi_head_attention(params, query, key, value, mask=None):
    """query/key/value: [seq_len, batch, d_model] (PyTorch layout).
    mask (optional): [seq_q or 1, seq_k, batch or 1], nonzero = visible."""
    Sq, B, Dm = query.shape
    Sk = key.shape[0]
    H = params["heads"]
    Dk = Dm // H
    assert H * Dk == Dm, "d_model must be divisible by heads"
    scale = 1.0 / math.sqrt(Dk)

    def to_bsd(x, S):
        # [S, B, Dm] -> [B*S, Dm]  (single wrapper transpose per distinct input)
        return jnp.transpose(x, (1, 0, 2)).reshape(B * S, Dm)

    if (query is key) and (key is value):
        # Fused QKV projection: one matmul, x read from HBM once.
        w_qkv = jnp.concatenate([params["wq"], params["wk"], params["wv"]], axis=1)
        b_qkv = jnp.concatenate([params["bq"], params["bk"], params["bv"]])
        qkv = pallas_linear(to_bsd(query, Sq), w_qkv, b_qkv).reshape(B, Sq, 3 * Dm)
        q = qkv[..., :Dm]
        k = qkv[..., Dm:2 * Dm]
        v = qkv[..., 2 * Dm:]
    else:
        q = pallas_linear(to_bsd(query, Sq), params["wq"], params["bq"]).reshape(B, Sq, Dm)
        k = pallas_linear(to_bsd(key, Sk), params["wk"], params["bk"]).reshape(B, Sk, Dm)
        v = pallas_linear(to_bsd(value, Sk), params["wv"], params["bv"]).reshape(B, Sk, Dm)

    if mask is None:
        mask_arr = None
    else:
        # [Sq|1, Sk, B|1] -> [B|1, Sq|1, Sk]; {0,1} float, NOT broadcast to full B/Sq.
        mask_arr = jnp.transpose((mask != 0).astype(jnp.float32), (2, 0, 1))

    o = pallas_flash_attention(q, k, v, mask_arr, scale, H)        # [B, Sq, Dm]
    out = pallas_linear(o.reshape(B * Sq, Dm), params["wo"], params["bo"])
    return jnp.transpose(out.reshape(B, Sq, Dm), (1, 0, 2))        # [Sq, B, Dm]


# ---------------------------- pure-JAX reference --------------------------- #

def reference_mha(params, query, key, value, mask=None):
    Sq, B, Dm = query.shape
    Sk = key.shape[0]
    H = params["heads"]
    Dk = Dm // H

    def proj(x, w, b, s):
        return (x.reshape(-1, Dm) @ w + b).reshape(s, B, H, Dk)

    q = proj(query, params["wq"], params["bq"], Sq)
    k = proj(key, params["wk"], params["bk"], Sk)
    v = proj(value, params["wv"], params["bv"], Sk)

    scores = jnp.einsum('ibhd,jbhd->ijbh', q, k) * (1.0 / math.sqrt(Dk))
    if mask is not None:
        mask4 = (mask != 0)[..., None]                 # [Sq|1, Sk, B|1, 1]
        scores = jnp.where(mask4, scores, -jnp.inf)
    attn = jax.nn.softmax(scores, axis=1)
    x = jnp.einsum('ijbh,jbhd->ibhd', attn, v).reshape(Sq, B, Dm)
    return x @ params["wo"] + params["bo"]


# --------------------------------- main ------------------------------------ #

def init_params(key, d_model, heads):
    ks = jax.random.split(key, 8)
    bound = 1.0 / math.sqrt(d_model)

    def u(k, shape):
        return jax.random.uniform(k, shape, jnp.float32, -bound, bound)

    return {
        "heads": heads,
        "wq": u(ks[0], (d_model, d_model)), "bq": u(ks[1], (d_model,)),
        "wk": u(ks[2], (d_model, d_model)), "bk": u(ks[3], (d_model,)),
        "wv": u(ks[4], (d_model, d_model)), "bv": u(ks[5], (d_model,)),
        "wo": u(ks[6], (d_model, d_model)), "bo": u(ks[7], (d_model,)),
    }


if __name__ == "__main__":
    seq_len, batch, d_model, heads = 8, 2, 32, 4

    root = jax.random.PRNGKey(0)
    kp, kq, kk_key, kv_key = jax.random.split(root, 4)
    params = init_params(kp, d_model, heads)

    x_self = jax.random.normal(kq, (seq_len, batch, d_model), jnp.float32)
    # causal mask [seq_q, seq_k, batch=1] (size-1 batch dim broadcasts)
    mask = jnp.tril(jnp.ones((seq_len, seq_len), jnp.float32))[:, :, None]

    # 1) Self-attention with a causal mask (fused-QKV path).
    out = multi_head_attention(params, x_self, x_self, x_self, mask)
    out = jax.block_until_ready(out)
    ref = reference_mha(params, x_self, x_self, x_self, mask)
    assert out.shape == (seq_len, batch, d_model)
    assert jnp.allclose(out, ref, atol=1e-4, rtol=1e-4), (
        f"self-attn max abs err = {jnp.max(jnp.abs(out - ref))}")

    # 2) Cross-attention without a mask (un-fused path, mask=None path).
    key_t = jax.random.normal(kk_key, (seq_len, batch, d_model), jnp.float32)
    value = jax.random.normal(kv_key, (seq_len, batch, d_model), jnp.float32)
    out2 = multi_head_attention(params, x_self, key_t, value, None)
    out2 = jax.block_until_ready(out2)
    ref2 = reference_mha(params, x_self, key_t, value, None)
    assert jnp.allclose(out2, ref2, atol=1e-4, rtol=1e-4), (
        f"cross-attn max abs err = {jnp.max(jnp.abs(out2 - ref2))}")

    print("KERNEL_OK")
</pallas_src>

<mosaic_0001>
module attributes {stable_mosaic.version = 11 : i64} {
  func.func @_matmul_kernel(%arg0: i32, %arg1: i32, %arg2: i32, %arg3: memref<16x32xf32, #tpu.memory_space<vmem>>, %arg4: memref<32x96xf32, #tpu.memory_space<vmem>>, %arg5: memref<1x96xf32, #tpu.memory_space<vmem>>, %arg6: memref<16x96xf32, #tpu.memory_space<vmem>>, %arg7: memref<16x96xf32, #tpu.memory_space<vmem>>) attributes {dimension_semantics = [#tpu.dimension_semantics<parallel>, #tpu.dimension_semantics<parallel>, #tpu.dimension_semantics<arbitrary>], iteration_bounds = array<i64: 1, 1, 1>, scalar_prefetch = 0 : i64, scratch_operands = 1 : i64, tpu.core_type = #tpu.core_type<tc>, window_params = [{transform_indices = @transform_0, window_bounds = array<i64: 16, 32>}, {transform_indices = @transform_1, window_bounds = array<i64: 32, 96>}, {transform_indices = @transform_2, window_bounds = array<i64: 1, 96>}, {transform_indices = @transform_3, window_bounds = array<i64: 16, 96>}]} {
    %c0_i32 = arith.constant 0 : i32
    %0 = arith.cmpi eq, %arg2, %c0_i32 : i32
    %1 = arith.extui %0 : i1 to i32
    %c0_i32_0 = arith.constant 0 : i32
    %2 = arith.cmpi ne, %1, %c0_i32_0 : i32
    scf.if %2 {
      %cst_10 = arith.constant 0.000000e+00 : f32
      %12 = vector.broadcast %cst_10 : f32 to vector<16x96xf32>
      %c0_11 = arith.constant 0 : index
      %c0_12 = arith.constant 0 : index
      %13 = vector.load %arg7[%c0_11, %c0_12] : memref<16x96xf32, #tpu.memory_space<vmem>>, vector<16x96xf32>
      tpu.vector_store %arg7[%c0_11, %c0_12], %12 {strides = array<i32>} : memref<16x96xf32, #tpu.memory_space<vmem>>, vector<16x96xf32>,
    } else {
    }
    %c0 = arith.constant 0 : index
    %c0_1 = arith.constant 0 : index
    %3 = vector.load %arg7[%c0, %c0_1] : memref<16x96xf32, #tpu.memory_space<vmem>>, vector<16x96xf32>
    %c0_2 = arith.constant 0 : index
    %c0_3 = arith.constant 0 : index
    %4 = vector.load %arg3[%c0_2, %c0_3] : memref<16x32xf32, #tpu.memory_space<vmem>>, vector<16x32xf32>
    %c0_4 = arith.constant 0 : index
    %c0_5 = arith.constant 0 : index
    %5 = vector.load %arg4[%c0_4, %c0_5] : memref<32x96xf32, #tpu.memory_space<vmem>>, vector<32x96xf32>
    %cst = arith.constant dense<0.000000e+00> : vector<16x96xf32>
    %6 = tpu.matmul %4, %5, %cst {dimension_numbers = #tpu.dot_dimension_numbers<[1], [0], [0], [1], [0, 0, 1, 1], [], []>} : vector<16x32xf32>, vector<32x96xf32>, vector<16x96xf32> -> vector<16x96xf32>
    %7 = arith.addf %3, %6 : vector<16x96xf32>
    %c0_6 = arith.constant 0 : index
    %c0_7 = arith.constant 0 : index
    %8 = vector.load %arg7[%c0_6, %c0_7] : memref<16x96xf32, #tpu.memory_space<vmem>>, vector<16x96xf32>
    tpu.vector_store %arg7[%c0_6, %c0_7], %7 {strides = array<i32>} : memref<16x96xf32, #tpu.memory_space<vmem>>, vector<16x96xf32>,
    %c0_i32_8 = arith.constant 0 : i32
    %9 = arith.cmpi eq, %arg2, %c0_i32_8 : i32
    %10 = arith.extui %9 : i1 to i32
    %c0_i32_9 = arith.constant 0 : i32
    %11 = arith.cmpi ne, %10, %c0_i32_9 : i32
    scf.if %11 {
      %c0_10 = arith.constant 0 : index
      %c0_11 = arith.constant 0 : index
      %12 = vector.load %arg7[%c0_10, %c0_11] : memref<16x96xf32, #tpu.memory_space<vmem>>, vector<16x96xf32>
      %c0_12 = arith.constant 0 : index
      %c0_13 = arith.constant 0 : index
      %13 = vector.load %arg5[%c0_12, %c0_13] : memref<1x96xf32, #tpu.memory_space<vmem>>, vector<1x96xf32>
      %14 = vector.broadcast %13 : vector<1x96xf32> to vector<16x96xf32>
      %15 = arith.addf %12, %14 : vector<16x96xf32>
      %c0_14 = arith.constant 0 : index
      %c0_15 = arith.constant 0 : index
      %16 = vector.load %arg6[%c0_14, %c0_15] : memref<16x96xf32, #tpu.memory_space<vmem>>, vector<16x96xf32>
      tpu.vector_store %arg6[%c0_14, %c0_15], %15 {strides = array<i32>} : memref<16x96xf32, #tpu.memory_space<vmem>>, vector<16x96xf32>,
    } else {
    }
    return
  }
  func.func @transform_0(%arg0: i32, %arg1: i32, %arg2: i32) -> (i32, i32) {
    %c0_i32 = arith.constant 0 : i32
    return %arg0, %arg2 : i32, i32
  }
  func.func @transform_1(%arg0: i32, %arg1: i32, %arg2: i32) -> (i32, i32) {
    %c0_i32 = arith.constant 0 : i32
    return %arg2, %arg1 : i32, i32
  }
  func.func @transform_2(%arg0: i32, %arg1: i32, %arg2: i32) -> (i32, i32) {
    %c0_i32 = arith.constant 0 : i32
    %c0_i32_0 = arith.constant 0 : i32
    return %c0_i32, %arg1 : i32, i32
  }
  func.func @transform_3(%arg0: i32, %arg1: i32, %arg2: i32) -> (i32, i32) {
    %c0_i32 = arith.constant 0 : i32
    return %arg0, %arg1 : i32, i32
  }
}

</mosaic_0001>

<llo_original>
// kernel: tpu_custom_call.1
$region0: #{tpu_custom_call.1}
  #allocation0 [shape = 'u32[]', space=smem, size = 0x4, offset = 0x4, fixed_abs, tag = 'smem constant byte address 0x4 - core index']
  #allocation1 [shape = 'u32[144,128]{1,0:T(1,128)}', space=vmem, size = 0x12000, scoped, tag = 'internal scratch']
  #allocation2 [shape = 'f32[16,96]{1,0:T(8,128)}', space=vmem, size = 0x2000, scoped, tag = 'scratch operand']
  %s0 = inlined_call_operand.hbm [shape: f32[16,32], index: 0, kind: input, shape index: {}]
  %s1 = inlined_call_operand.hbm [shape: f32[32,96], index: 1, kind: input, shape index: {}]
  %s2 = inlined_call_operand.vmem [shape: f32[1,96], index: 2, kind: input, shape index: {}]
  %s3 = inlined_call_operand.hbm [shape: f32[16,96], index: 3, kind: output, shape index: {}]
  %s4 = sld [smem:[#allocation0]]
  $region38: #{tpu_custom_call.1} parent=0
    _
  %s6 = ssub.s32 1, %s4
  %s7 = scalar_select 0, %s6, %s4
  $region1: #{tpu_custom_call.1} parent=0
    #allocation3 [shape = 'u8[8192]{0}', space=vmem, size = 0x2000, scoped, tag = 'input window, operand 0, single buffered']
    #allocation4 [shape = 's32[1]{0}', space=sflag, size = 0x4, scoped, tag = 'scoped memory for tpu_custom_call.1']
    #allocation5 [shape = 's32[1]{0}', space=sflag, size = 0x4, scoped, tag = 'scoped memory for tpu_custom_call.1']
    #allocation6 [shape = 'u8[16384]{0}', space=vmem, size = 0x4000, scoped, tag = 'input window, operand 1, single buffered']
    #allocation7 [shape = 's32[1]{0}', space=sflag, size = 0x4, scoped, tag = 'scoped memory for tpu_custom_call.1']
    #allocation8 [shape = 'u8[8192]{0}', space=vmem, size = 0x2000, scoped, tag = 'output window, operand 0, single buffered']
    %8 = vsyncpa [#allocation4], 0
    %9 = vsyncpa [#allocation7], 0
    %10 = vsyncpa [#allocation5], 0
    // Predicated region
    $region2: #{tpu_custom_call.1} parent=1 // pred_check
      _
    $region3: #{tpu_custom_call.1} parent=1 // pred_check_branch
      %12 = sbr.rel (0) target = $region5
    $region4: #{tpu_custom_call.1} parent=1 // pred_region
      %s14 = ssub.s32 256, 256
      %15 = vsyncadd [#allocation4], %s14
      %s16 = sshll.u32 [#allocation3], 4
      %s17 = int_to_ptr.vmem [resolvable:$true] %s16
      %22 = dma.hbm_to_vmem [thread:$0]  %s0, 256, %s17, [#allocation4], 128, 128, 8
    $region5: #{tpu_custom_call.1} parent=1 // pred_fallthru
      _
    // Predicated region
    $region6: #{tpu_custom_call.1} parent=1 // pred_check
      _
    $region7: #{tpu_custom_call.1} parent=1 // pred_check_branch
      %24 = sbr.rel (0) target = $region9
    $region8: #{tpu_custom_call.1} parent=1 // pred_region
      %s26 = ssub.s32 512, 512
      %27 = vsyncadd [#allocation7], %s26
      %s28 = sshll.u32 [#allocation6], 4
      %s29 = int_to_ptr.vmem [resolvable:$true] %s28
      %34 = dma.hbm_to_vmem [thread:$0]  %s1, 512, %s29, [#allocation7], 128, 128, 8
    $region9: #{tpu_custom_call.1} parent=1 // pred_fallthru
      _
    // Predicated region
    $region10: #{tpu_custom_call.1} parent=1 // pred_check
      _
    $region11: #{tpu_custom_call.1} parent=1 // pred_check_branch
      %36 = sbr.rel (0) target = $region13
    $region12: #{tpu_custom_call.1} parent=1 // pred_region
      _
    $region13: #{tpu_custom_call.1} parent=1 // pred_fallthru
      _
    // Predicated region
    $region14: #{tpu_custom_call.1} parent=1 // pred_check
      _
    $region15: #{tpu_custom_call.1} parent=1 // pred_check_branch
      %38 = sbr.rel (0) target = $region17
    $region16: #{tpu_custom_call.1} parent=1 // pred_region
      %39 = dma.done [#allocation4], 256
    $region17: #{tpu_custom_call.1} parent=1 // pred_fallthru
      _
    // Predicated region
    $region18: #{tpu_custom_call.1} parent=1 // pred_check
      _
    $region19: #{tpu_custom_call.1} parent=1 // pred_check_branch
      %41 = sbr.rel (0) target = $region21
    $region20: #{tpu_custom_call.1} parent=1 // pred_region
      %42 = dma.done [#allocation7], 512
    $region21: #{tpu_custom_call.1} parent=1 // pred_fallthru
      _
    %p43 = scmp.eq.s32.totalorder 0, 0
    // Predicated region
    $region22: #{tpu_custom_call.1} parent=1 // pred_check
      %p44 = pneg %p43
    $region23: #{tpu_custom_call.1} parent=1 // pred_check_branch
      %46 = sbr.rel (%p44) target = $region25
    $region24: #{tpu_custom_call.1} parent=1 // pred_region
      %vm47 = vcmask 785408
      %48 = vst.msk [vmem:[#allocation2] sm:$0xff] %vm47, 0.0
      %49 = vst.msk [vmem:[#allocation2 + $0x8] sm:$0xff] %vm47, 0.0
    $region25: #{tpu_custom_call.1} parent=1 // pred_fallthru
      _
    %v50 = vld [vmem:[#allocation2] sm:$0xff]
    %v51 = vld [vmem:[#allocation2 + $0x8] sm:$0xff]
    %v52 = vld [vmem:[#allocation3] sm:$0xff]
    %v53 = vld [vmem:[#allocation3 + $0x8] sm:$0xff]
    %v54 = vld [vmem:[#allocation6] sm:$0xff]
    %v55 = vld [vmem:[#allocation6 + $0x8] sm:$0xff]
    %v56 = vld [vmem:[#allocation6 + $0x10] sm:$0xff]
    %v57 = vld [vmem:[#allocation6 + $0x18] sm:$0xff]
    %vm58 = vcmask 261120
    %v60 = vsel %vm58, %v52, 0
    %v63 = vsel %vm58, %v53, 0
    %65 = vmatprep.subr.mxu0 0.0
    %66 = vmatpush1.msra.mxu0 0.0
    %67 = vmatprep.subr.mxu0 0.0
    %68 = vmatpush1.msra.mxu0 0.0
    %69 = vmatprep.subr.mxu0 0.0
    %70 = vmatpush1.msra.mxu0 0.0
    %71 = vmatprep.subr.mxu0 0.0
    %72 = vmatpush1.msra.mxu0 0.0
    %73 = vmatprep.subr.mxu0 0.0
    %74 = vmatpush1.msra.mxu0 0.0
    %75 = vmatprep.subr.mxu0 0.0
    %76 = vmatpush1.msra.mxu0 0.0
    %77 = vmatprep.subr.mxu0 0.0
    %78 = vmatpush1.msra.mxu0 0.0
    %79 = vmatprep.subr.mxu0 0.0
    %80 = vmatpush1.msra.mxu0 0.0
    %81 = vmatprep.subr.mxu0 0.0
    %82 = vmatpush1.msra.mxu0 0.0
    %83 = vmatprep.subr.mxu0 0.0
    %84 = vmatpush1.msra.mxu0 0.0
    %85 = vmatprep.subr.mxu0 0.0
    %86 = vmatpush1.msra.mxu0 0.0
    %87 = vmatprep.subr.mxu0 0.0
    %88 = vmatpush1.msra.mxu0 0.0
    %89 = vmatprep.subr.mxu0 0.0
    %90 = vmatpush1.msra.mxu0 %v57
    %91 = vmatprep.subr.mxu0 0.0
    %92 = vmatpush1.msra.mxu0 %v56
    %93 = vmatprep.subr.mxu0 0.0
    %94 = vmatpush1.msra.mxu0 %v55
    %95 = vmatprep.subr.mxu0 0.0
    %96 = vmatpush1.msra.mxu0 %v54
    %97 = vmatprep.subr.mxu0 0.0
    %98 = vmatpush2.msra.mxu0 0.0
    %99 = vmatprep.subr.mxu0 0.0
    %100 = vmatpush2.msra.mxu0 0.0
    %101 = vmatprep.subr.mxu0 0.0
    %102 = vmatpush2.msra.mxu0 0.0
    %103 = vmatprep.subr.mxu0 0.0
    %104 = vmatpush2.msra.mxu0 0.0
    %105 = vmatprep.subr.mxu0 0.0
    %106 = vmatpush2.msra.mxu0 0.0
    %107 = vmatprep.subr.mxu0 0.0
    %108 = vmatpush2.msra.mxu0 0.0
    %109 = vmatprep.subr.mxu0 0.0
    %110 = vmatpush2.msra.mxu0 0.0
    %111 = vmatprep.subr.mxu0 0.0
    %112 = vmatpush2.msra.mxu0 0.0
    %113 = vmatprep.subr.mxu0 0.0
    %114 = vmatpush2.msra.mxu0 0.0
    %115 = vmatprep.subr.mxu0 0.0
    %116 = vmatpush2.msra.mxu0 0.0
    %117 = vmatprep.subr.mxu0 0.0
    %118 = vmatpush2.msra.mxu0 0.0
    %119 = vmatprep.subr.mxu0 0.0
    %120 = vmatpush2.msra.mxu0 0.0
    %121 = vmatprep.subr.mxu0 0.0
    %122 = vmatpush2.msra.mxu0 0.0
    %123 = vmatprep.subr.mxu0 0.0
    %124 = vmatpush2.msra.mxu0 0.0
    %125 = vmatprep.subr.mxu0 0.0
    %126 = vmatpush2.msra.mxu0 0.0
    %127 = vmatprep.subr.mxu0 0.0
    %128 = vmatpush2.msra.mxu0 0.0
    %129 = vmatprep.mubr.f32.mxu0 0.0
    %130 = vmatmul.mubr.f32.gmra.mxu0 %v60
    %v131 = vpop.f32.mrf.mxu0
    %v132 = vadd.f32 0.0, %v131
    %v133 = vpop.f32.mrf.mxu0
    %134 = vmatprep.mubr.f32.mxu0 0.0
    %135 = vmatmul.mubr.f32.gmra.mxu0 %v63
    %v136 = vpop.f32.mrf.mxu0
    %v137 = vadd.f32 0.0, %v136
    %v138 = vpop.f32.mrf.mxu0
    %139 = vdwg.mxu0
    %v140 = vadd.f32 %v50, %v132
    %v141 = vadd.f32 %v51, %v137
    %vm142 = vcmask 785408
    %143 = vst.msk [vmem:[#allocation2] sm:$0xff] %vm142, %v140
    %144 = vst.msk [vmem:[#allocation2 + $0x8] sm:$0xff] %vm142, %v141
    // Predicated region
    $region26: #{tpu_custom_call.1} parent=1 // pred_check
      %p145 = pneg %p43
    $region27: #{tpu_custom_call.1} parent=1 // pred_check_branch
      %147 = sbr.rel (%p145) target = $region29
    $region28: #{tpu_custom_call.1} parent=1 // pred_region
      %v148 = vld [vmem:[#allocation2] sm:$0xff]
      %v149 = vld [vmem:[#allocation2 + $0x8] sm:$0xff]
      %v150 = vld [vmem:[%s2] sm:$0x1]
      %v152 = vlaneseq
      %v153 = vshrl.u32 %v152, 7
      %v154 = vsub.s32 0, %v153
      %v155 = vrot.slane %v150, %v154
      %v157 = vadd.f32 %v148, %v155
      %v158 = vadd.f32 %v149, %v155
      %159 = vst.msk [vmem:[#allocation8] sm:$0xff] %vm142, %v157
      %160 = vst.msk [vmem:[#allocation8 + $0x8] sm:$0xff] %vm142, %v158
    $region29: #{tpu_custom_call.1} parent=1 // pred_fallthru
      _
    // Predicated region
    $region30: #{tpu_custom_call.1} parent=1 // pred_check
      _
    $region31: #{tpu_custom_call.1} parent=1 // pred_check_branch
      %162 = sbr.rel (0) target = $region33
    $region32: #{tpu_custom_call.1} parent=1 // pred_region
      %s164 = ssub.s32 256, 256
      %165 = vsyncadd [#allocation5], %s164
      %s166 = sshll.u32 [#allocation8], 4
      %s167 = int_to_ptr.vmem [resolvable:$true] %s166
      %172 = dma.vmem_to_hbm [thread:$0]  %s167, 256, %s3, [#allocation5], 128, 128, 8
    $region33: #{tpu_custom_call.1} parent=1 // pred_fallthru
      _
    // Predicated region
    $region34: #{tpu_custom_call.1} parent=1 // pred_check
      _
    $region35: #{tpu_custom_call.1} parent=1 // pred_check_branch
      %174 = sbr.rel (0) target = $region37
    $region36: #{tpu_custom_call.1} parent=1 // pred_region
      %175 = dma.done [#allocation5], 256
    $region37: #{tpu_custom_call.1} parent=1 // pred_fallthru
      _
    %176 = vsyncpa [#allocation4], 1
    %177 = vsyncpa [#allocation7], 1
    %178 = vsyncpa [#allocation5], 1

</llo_original>
